<compile_context>
chip_gen: v5e
topology: v5e:2x2
jax: 0.10.0
libtpu: 0.0.40
codegen_flags: <defaults>
</compile_context>

<pallas_src>
import jax
import jax.numpy as jnp
from jax.experimental import pallas as pl
from jax.experimental.pallas import tpu as pltpu


def mesh_probes_kernel(x_ref, m_ref, w_ref, o_ref):
    # x_ref: (TB, S, H)  birnn outputs (native dtype)
    # m_ref: (TB, 1, S)  int32 mask (1 = valid token)
    # w_ref: (H, P)      self_attn.weight^T, already in x dtype (resident MXU weight)
    # o_ref: (TB, P, H)  per-probe context vectors
    TB, S, H = x_ref.shape
    P = w_ref.shape[1]

    x = x_ref[...]                                                  # (TB, S, H)

    # --- attention logits -----------------------------------------------------
    # Stream the large activation through the MXU against the small resident
    # (H, P) weight; f32 accumulation.  This removes ~half of all MXU
    # weight-push work vs. the batched 'bph,bsh->bps' form.
    scores = jnp.dot(x.reshape(TB * S, H), w_ref[...],
                     preferred_element_type=jnp.float32)            # (TB*S, P)
    # Small f32 (S, P) -> (P, S) transpose per batch element (XLU, off the
    # MXU/VPU critical slots) so the softmax reduces over lanes.
    scores = jnp.swapaxes(scores.reshape(TB, S, P), 1, 2)           # (TB, P, S)

    # --- masked softmax over the sequence axis (lanes), f32 math --------------
    # NOTE: a fully-masked row yields NaN, intentionally matching PyTorch
    # masked_fill(-inf) + softmax semantics.
    scores = jnp.where(m_ref[...] > 0, scores, -jnp.inf)
    scores = scores - jnp.max(scores, axis=-1, keepdims=True)
    e = jnp.exp(scores)
    # Exact reciprocal: only TB*P denominators, EUP is nowhere near saturated.
    attn = e / jnp.sum(e, axis=-1, keepdims=True)                   # (TB, P, S)

    # --- context vectors -------------------------------------------------------
    # (TB, P, S) @ (TB, S, H) -> (TB, P, H).  x_b stationary here is the
    # unavoidable compute floor.  attn is cast to the input dtype (bf16-native
    # MXU path for bf16 inputs) with f32 accumulation — intentional precision
    # trade vs. the f32 PyTorch reference.
    ctx = jnp.einsum('bps,bsh->bph', attn.astype(x.dtype), x,
                     preferred_element_type=jnp.float32)

    o_ref[...] = ctx.astype(o_ref.dtype)


def _pick_batch_block(B, S, H, P, x_itemsize, vmem_phys, min_steps=4):
    """Generation-aware batch-tile sizing.

    Keeps the double-buffered working set (x / mask / output tiles, the
    resident weight, and the f32 softmax temporaries) under ~40% of physical
    VMEM, and guarantees >= min_steps grid steps whenever B allows it so the
    BlockSpec pipeline overlaps DMA with compute and the parallel grid axis
    feeds both v7x TensorCores.
    """
    per_b = (2 * S * H * x_itemsize        # x tile, double-buffered
             + 2 * 1 * S * 4               # int32 mask tile, double-buffered
             + 3 * P * S * 4               # scores / exp / attn f32 temporaries
             + P * H * 4                   # f32 context accumulator
             + 2 * P * H * x_itemsize)     # output tile, double-buffered
    weight_bytes = 2 * H * P * x_itemsize  # resident (H, P) weight
    budget = max(int(vmem_phys * 0.4) - weight_bytes, per_b)

    tb = max(1, budget // max(per_b, 1))
    if B >= min_steps:
        tb = min(tb, max(1, B // min_steps))   # >= min_steps grid steps
    else:
        tb = 1                                 # still >= 2 steps when B >= 2
    tb = int(tb)

    padded_b = ((B + tb - 1) // tb) * tb
    block_bytes = per_b * tb + weight_bytes
    return tb, padded_b, block_bytes


def mesh_probes_forward(birnn_outputs, masks, weight):
    """birnn_outputs: (B, S, H); masks: (B, S) bool; weight: (P, H).
    Returns (B, P*H) — matches MeSHProbes.forward (context_vectors.view(B, -1))."""
    B, S, H = birnn_outputs.shape
    P, Hw = weight.shape
    assert Hw == H

    x_itemsize = jnp.dtype(birnn_outputs.dtype).itemsize

    # Generation-aware VMEM ceiling (v7x: 64 MiB physical; v5e/v6e: 128 MiB).
    try:
        vmem_phys = int(pltpu.get_tpu_info().vmem_capacity_bytes)
    except Exception:
        vmem_phys = 64 << 20   # conservative fallback (v7x)

    block_b, padded_b, block_bytes = _pick_batch_block(
        B, S, H, P, x_itemsize, vmem_phys)

    x = birnn_outputs
    # TODO(synk): on v5e an int8 mask (or scalar-prefetched lengths) would save
    # a little HBM bandwidth; int32 kept for simplicity/portability.
    masks_i = masks.astype(jnp.int32).reshape(B, 1, S)
    # Transpose + cast W once in the wrapper: (H, P) resident MXU weight.
    w_t = weight.T.astype(birnn_outputs.dtype)

    if padded_b != B:
        pad = padded_b - B
        x = jnp.pad(x, ((0, pad), (0, 0), (0, 0)))
        # padded rows get all-valid masks so their (discarded) softmax stays
        # finite; they are sliced off before anything reads them.
        masks_i = jnp.pad(masks_i, ((0, pad), (0, 0), (0, 0)), constant_values=1)

    vmem_limit = int(min(vmem_phys // 2, max(16 << 20, 2 * block_bytes)))

    out = pl.pallas_call(
        mesh_probes_kernel,
        out_shape=jax.ShapeDtypeStruct((padded_b, P, H), birnn_outputs.dtype),
        grid_spec=pltpu.PrefetchScalarGridSpec(
            num_scalar_prefetch=0,
            grid=(padded_b // block_b,),
            in_specs=[
                pl.BlockSpec((block_b, S, H), lambda b: (b, 0, 0)),  # birnn_outputs
                pl.BlockSpec((block_b, 1, S), lambda b: (b, 0, 0)),  # masks
                pl.BlockSpec((H, P), lambda b: (0, 0)),              # weight^T
            ],
            out_specs=pl.BlockSpec((block_b, P, H), lambda b: (b, 0, 0)),
        ),
        compiler_params=pltpu.CompilerParams(
            dimension_semantics=("parallel",),
            vmem_limit_bytes=vmem_limit),
    )(x, masks_i, w_t)

    # context_vectors.view(B, -1): free reshape in the wrapper (XLA), avoids an
    # in-kernel sublane->lane relayout of a flattened (TB, P*H) store.
    return out[:B].reshape(B, P * H)


def xavier_uniform(key, shape, dtype=jnp.float32):
    # nn.init.xavier_uniform_ for a (fan_out, fan_in) Linear weight
    fan_out, fan_in = shape
    limit = (6.0 / (fan_in + fan_out)) ** 0.5
    return jax.random.uniform(key, shape, dtype, minval=-limit, maxval=limit)


if __name__ == "__main__":
    B, S, H, P = 2, 8, 32, 4   # batch, seq, hidden_size, n_probes

    key = jax.random.PRNGKey(0)
    k_x, k_w, k_m = jax.random.split(key, 3)

    birnn_outputs = jax.random.normal(k_x, (B, S, H), dtype=jnp.float32)
    # deterministic masks: first row has last 3 positions padded, second fully valid
    lengths = jnp.array([S - 3, S], dtype=jnp.int32)
    masks = (jnp.arange(S)[None, :] < lengths[:, None])             # (B, S) bool
    weight = xavier_uniform(k_w, (P, H))                            # self_attn.weight

    out = mesh_probes_forward(birnn_outputs, masks, weight)
    out = jax.block_until_ready(out)
    assert out.shape == (B, P * H)

    # reference check in plain JAX (same math as the PyTorch module)
    scores_ref = jnp.einsum('bsh,ph->bps', birnn_outputs, weight)
    scores_ref = jnp.where(masks[:, None, :], scores_ref, -jnp.inf)
    attn_ref = jax.nn.softmax(scores_ref, axis=-1)
    ctx_ref = jnp.einsum('bps,bsh->bph', attn_ref, birnn_outputs).reshape(B, -1)
    # tolerance covers TPU default-precision (bf16-pass) matmul differences
    # between the kernel and the XLA reference; the softmax reciprocal itself
    # is now exact.
    assert jnp.allclose(out, ctx_ref, atol=2e-3, rtol=2e-3)

    print("KERNEL_OK")
</pallas_src>

<mosaic_0001>
module attributes {stable_mosaic.version = 11 : i64} {
  func.func @mesh_probes_kernel(%arg0: i32, %arg1: memref<1x8x32xf32, #tpu.memory_space<vmem>>, %arg2: memref<1x1x8xi32, #tpu.memory_space<vmem>>, %arg3: memref<32x4xf32, #tpu.memory_space<vmem>>, %arg4: memref<1x4x32xf32, #tpu.memory_space<vmem>>) attributes {dimension_semantics = [#tpu.dimension_semantics<parallel>], iteration_bounds = array<i64: 2>, scalar_prefetch = 0 : i64, scratch_operands = 0 : i64, tpu.core_type = #tpu.core_type<tc>, window_params = [{transform_indices = @transform_0, window_bounds = array<i64: 1, 8, 32>}, {transform_indices = @transform_1, window_bounds = array<i64: 1, 1, 8>}, {pipeline_mode = #tpu.pipeline_mode<synchronous>, transform_indices = @transform_2, window_bounds = array<i64: 32, 4>}, {transform_indices = @transform_3, window_bounds = array<i64: 1, 4, 32>}]} {
    %c0 = arith.constant 0 : index
    %c0_0 = arith.constant 0 : index
    %c0_1 = arith.constant 0 : index
    %0 = vector.load %arg1[%c0, %c0_0, %c0_1] : memref<1x8x32xf32, #tpu.memory_space<vmem>>, vector<1x8x32xf32>
    %1 = vector.shape_cast %0 : vector<1x8x32xf32> to vector<8x32xf32>
    %c0_2 = arith.constant 0 : index
    %c0_3 = arith.constant 0 : index
    %2 = vector.load %arg3[%c0_2, %c0_3] : memref<32x4xf32, #tpu.memory_space<vmem>>, vector<32x4xf32>
    %cst = arith.constant dense<0.000000e+00> : vector<8x4xf32>
    %3 = tpu.matmul %1, %2, %cst {dimension_numbers = #tpu.dot_dimension_numbers<[1], [0], [0], [1], [0, 0, 1, 1], [], []>} : vector<8x32xf32>, vector<32x4xf32>, vector<8x4xf32> -> vector<8x4xf32>
    %4 = vector.shape_cast %3 : vector<8x4xf32> to vector<1x8x4xf32>
    %5 = tpu.transpose %4, [0, 2, 1] : vector<1x8x4xf32> -> vector<1x4x8xf32>
    %c0_4 = arith.constant 0 : index
    %c0_5 = arith.constant 0 : index
    %c0_6 = arith.constant 0 : index
    %6 = vector.load %arg2[%c0_4, %c0_5, %c0_6] : memref<1x1x8xi32, #tpu.memory_space<vmem>>, vector<1x1x8xi32>
    %c0_i32 = arith.constant 0 : i32
    %7 = vector.broadcast %c0_i32 : i32 to vector<1x1x8xi32>
    %8 = arith.cmpi sgt, %6, %7 : vector<1x1x8xi32>
    %cst_7 = arith.constant 0xFF800000 : f32
    %9 = vector.shape_cast %8 : vector<1x1x8xi1> to vector<1x1x8xi1>
    %10 = vector.broadcast %9 : vector<1x1x8xi1> to vector<1x4x8xi1>
    %11 = vector.broadcast %cst_7 : f32 to vector<1x4x8xf32>
    %12 = arith.select %10, %5, %11 : vector<1x4x8xi1>, vector<1x4x8xf32>
    %cst_8 = arith.constant dense<0xFF800000> : vector<1x4xf32>
    %13 = vector.multi_reduction <maximumf>, %12, %cst_8 [2] : vector<1x4x8xf32> to vector<1x4xf32>
    %14 = vector.shape_cast %13 : vector<1x4xf32> to vector<1x4x1xf32>
    %15 = vector.broadcast %14 : vector<1x4x1xf32> to vector<1x4x8xf32>
    %16 = arith.subf %12, %15 : vector<1x4x8xf32>
    %17 = math.exp %16 : vector<1x4x8xf32>
    %cst_9 = arith.constant dense<0.000000e+00> : vector<1x4xf32>
    %18 = vector.multi_reduction <add>, %17, %cst_9 [2] : vector<1x4x8xf32> to vector<1x4xf32>
    %19 = vector.shape_cast %18 : vector<1x4xf32> to vector<1x4x1xf32>
    %20 = vector.broadcast %19 : vector<1x4x1xf32> to vector<1x4x8xf32>
    %21 = arith.divf %17, %20 : vector<1x4x8xf32>
    "tpu.trace_start"() <{level = 10 : i32, message = "bps,bsh->bph"}> : () -> ()
    %cst_10 = arith.constant dense<0.000000e+00> : vector<1x4x32xf32>
    %22 = tpu.matmul %21, %0, %cst_10 {dimension_numbers = #tpu.dot_dimension_numbers<[2], [1], [1], [2], [0, 0, 0, 1, 1, 2], [0], [0]>} : vector<1x4x8xf32>, vector<1x8x32xf32>, vector<1x4x32xf32> -> vector<1x4x32xf32>
    "tpu.trace_stop"() : () -> ()
    %c0_11 = arith.constant 0 : index
    %c0_12 = arith.constant 0 : index
    %c0_13 = arith.constant 0 : index
    %23 = vector.load %arg4[%c0_11, %c0_12, %c0_13] : memref<1x4x32xf32, #tpu.memory_space<vmem>>, vector<1x4x32xf32>
    tpu.vector_store %arg4[%c0_11, %c0_12, %c0_13], %22 {strides = array<i32>} : memref<1x4x32xf32, #tpu.memory_space<vmem>>, vector<1x4x32xf32>,
    return
  }
  func.func @transform_0(%arg0: i32) -> (i32, i32, i32) {
    %c0_i32 = arith.constant 0 : i32
    %c0_i32_0 = arith.constant 0 : i32
    %c0_i32_1 = arith.constant 0 : i32
    return %arg0, %c0_i32, %c0_i32_0 : i32, i32, i32
  }
  func.func @transform_1(%arg0: i32) -> (i32, i32, i32) {
    %c0_i32 = arith.constant 0 : i32
    %c0_i32_0 = arith.constant 0 : i32
    %c0_i32_1 = arith.constant 0 : i32
    return %arg0, %c0_i32, %c0_i32_0 : i32, i32, i32
  }
  func.func @transform_2(%arg0: i32) -> (i32, i32) {
    %c0_i32 = arith.constant 0 : i32
    %c0_i32_0 = arith.constant 0 : i32
    %c0_i32_1 = arith.constant 0 : i32
    return %c0_i32, %c0_i32_0 : i32, i32
  }
  func.func @transform_3(%arg0: i32) -> (i32, i32, i32) {
    %c0_i32 = arith.constant 0 : i32
    %c0_i32_0 = arith.constant 0 : i32
    %c0_i32_1 = arith.constant 0 : i32
    return %arg0, %c0_i32, %c0_i32_0 : i32, i32, i32
  }
}

</mosaic_0001>

<llo_original>
// kernel: tpu_custom_call.1
$region0: #{tpu_custom_call.1}
  #allocation0 [shape = 'u32[]', space=smem, size = 0x4, offset = 0x4, fixed_abs, tag = 'smem constant byte address 0x4 - core index']
  #allocation1 [shape = 'u32[72,128]{1,0:T(1,128)}', space=vmem, size = 0x9000, scoped, tag = 'internal scratch']
  %s0 = inlined_call_operand.vmem [shape: f32[2,8,32], index: 0, kind: input, shape index: {}]
  %s1 = inlined_call_operand.vmem [shape: s32[2,1,8], index: 1, kind: input, shape index: {}]
  %s2 = inlined_call_operand.vmem [shape: f32[32,4], index: 2, kind: input, shape index: {}]
  %s3 = inlined_call_operand.hbm [shape: f32[2,4,32], index: 3, kind: output, shape index: {}]
  %s4 = sld [smem:[#allocation0]]
  $region45: #{tpu_custom_call.1} parent=0
    _
  %s6 = ssub.s32 1, %s4
  %s7 = scalar_select 0, %s6, %s4
  $region1: #{tpu_custom_call.1} parent=0
    #allocation2 [shape = 'u8[4096]{0}', space=vmem, size = 0x1000, scoped, tag = 'output window, operand 0']
    #allocation3 [shape = 's32[2]{0}', space=sflag, size = 0x8, scoped, tag = 'scoped memory for tpu_custom_call.1']
    %8 = vsyncpa [#allocation3], 0
    %s9 = scalar_lea.sflag [#allocation3], 1
    %10 = vsyncpa %s9, 0
    loop: start=0, step=1, limit=4
    $region2: #{tpu_custom_call.1} parent=1 // loop_pre_header
      _
    $region3: #{tpu_custom_call.1} parent=1 // loop_header
      %s12 = sphi 0, %s16
      %p13 = scmp.ge.s32.totalorder %s12, 4
      %s22 = sphi 0, %s24
      %s25 = sphi 0, %s22
      %s26 = sphi 0, %s25
      %s42 = sphi 0, %s26
      %s48 = sphi 0, %s50
      %s51 = sphi 0, %s48
      %s52 = sphi 0, %s51
      %s68 = sphi 0, %s52
      %s72 = sphi 0, %s72
      %s74 = sphi 0, %s72
      %s75 = sphi 0, %s74
      %s89 = sphi 0, %s75
      %s95 = sphi 0, %s97
      %s98 = sphi 0, %s95
      %s99 = sphi 0, %s98
      %s115 = sphi 0, %s99
    $region4: #{tpu_custom_call.1} parent=1 // loop_header_branch
      %15 = sbr.rel (%p13) target = $region8
    $region5: #{tpu_custom_call.1} parent=1 // loop_body
      %s17 = ssub.s32 %s12, 1
      %s18 = ssub.s32 %s12, 2
      %s19 = sadd.s32 %s12, 1
      %s20 = ssub.s32 %s12, %s19
      %p21 = scmp.eq.s32.totalorder %s20, 0
      %s23 = sadd.s32 %s22, 1
      %s24 = scalar_select %p21, %s22, %s23
      %p27 = pneg %p21
      %p28 = scmp.eq.s32.totalorder %s12, 1
      %p29 = por %p27, %p28
      %p30 = scmp.ne.s32.totalorder %s22, %s25
      %p31 = scmp.eq.s32.totalorder %s12, 0
      %p32 = por %p30, %p31
      %p33 = scmp.ne.s32.totalorder %s22, %s25
      %p34 = scmp.eq.s32.totalorder %s17, 1
      %p35 = por %p33, %p34
      %p36 = scmp.ne.s32.totalorder %s25, %s26
      %p37 = scmp.eq.s32.totalorder %s17, 0
      %p38 = por %p36, %p37
      %p39 = scmp.ne.s32.totalorder %s25, %s26
      %p40 = scmp.eq.s32.totalorder %s18, 1
      %p41 = por %p39, %p40
      %p43 = scmp.ne.s32.totalorder %s26, %s42
      %p44 = scmp.eq.s32.totalorder %s18, 0
      %p45 = por %p43, %p44
      %s46 = ssub.s32 %s12, %s19
      %p47 = scmp.eq.s32.totalorder %s46, 0
      %s49 = sadd.s32 %s48, 1
      %s50 = scalar_select %p47, %s48, %s49
      %p53 = pneg %p47
      %p54 = scmp.eq.s32.totalorder %s12, 1
      %p55 = por %p53, %p54
      %p56 = scmp.ne.s32.totalorder %s48, %s51
      %p57 = scmp.eq.s32.totalorder %s12, 0
      %p58 = por %p56, %p57
      %p59 = scmp.ne.s32.totalorder %s48, %s51
      %p60 = scmp.eq.s32.totalorder %s17, 1
      %p61 = por %p59, %p60
      %p62 = scmp.ne.s32.totalorder %s51, %s52
      %p63 = scmp.eq.s32.totalorder %s17, 0
      %p64 = por %p62, %p63
      %p65 = scmp.ne.s32.totalorder %s51, %s52
      %p66 = scmp.eq.s32.totalorder %s18, 1
      %p67 = por %p65, %p66
      %p69 = scmp.ne.s32.totalorder %s52, %s68
      %p70 = scmp.eq.s32.totalorder %s18, 0
      %p71 = por %p69, %p70
      %s73 = sadd.s32 %s72, 1
      %p76 = scmp.eq.s32.totalorder %s12, 1
      %p77 = scmp.ne.s32.totalorder %s72, %s74
      %p78 = scmp.eq.s32.totalorder %s12, 0
      %p79 = por %p77, %p78
      %p80 = scmp.ne.s32.totalorder %s72, %s74
      %p81 = scmp.eq.s32.totalorder %s17, 1
      %p82 = por %p80, %p81
      %p83 = scmp.ne.s32.totalorder %s74, %s75
      %p84 = scmp.eq.s32.totalorder %s17, 0
      %p85 = por %p83, %p84
      %p86 = scmp.ne.s32.totalorder %s74, %s75
      %p87 = scmp.eq.s32.totalorder %s18, 1
      %p88 = por %p86, %p87
      %p90 = scmp.ne.s32.totalorder %s75, %s89
      %p91 = scmp.eq.s32.totalorder %s18, 0
      %p92 = por %p90, %p91
      %s93 = ssub.s32 %s12, %s19
      %p94 = scmp.eq.s32.totalorder %s93, 0
      %s96 = sadd.s32 %s95, 1
      %s97 = scalar_select %p94, %s95, %s96
      %p100 = pneg %p94
      %p101 = scmp.eq.s32.totalorder %s12, 1
      %p102 = por %p100, %p101
      %p103 = scmp.ne.s32.totalorder %s95, %s98
      %p104 = scmp.eq.s32.totalorder %s12, 0
      %p105 = por %p103, %p104
      %p106 = scmp.ne.s32.totalorder %s95, %s98
      %p107 = scmp.eq.s32.totalorder %s17, 1
      %p108 = por %p106, %p107
      %p109 = scmp.ne.s32.totalorder %s98, %s99
      %p110 = scmp.eq.s32.totalorder %s17, 0
      %p111 = por %p109, %p110
      %p112 = scmp.ne.s32.totalorder %s98, %s99
      %p113 = scmp.eq.s32.totalorder %s18, 1
      %p114 = por %p112, %p113
      %p116 = scmp.ne.s32.totalorder %s99, %s115
      %p117 = scmp.eq.s32.totalorder %s18, 0
      %p118 = por %p116, %p117
      %p119 = scmp.le.s32.totalorder 1, %s12
      %p120 = scmp.lt.s32.totalorder %s12, 3
      %p121 = pnand %p119, %p120
      %p122 = pneg %p121
      // Predicated region
      $region9: #{tpu_custom_call.1} parent=5 // pred_check
        _
      $region10: #{tpu_custom_call.1} parent=5 // pred_check_branch
        %124 = sbr.rel (%p121) target = $region12
      $region11: #{tpu_custom_call.1} parent=5 // pred_region
        %s125 = ssub.s32 %s12, 1
        // Predicated region
        $region13: #{tpu_custom_call.1} parent=11 // pred_check
          %p126 = pneg %p85
        $region14: #{tpu_custom_call.1} parent=11 // pred_check_branch
          %128 = sbr.rel (%p126) target = $region16
        $region15: #{tpu_custom_call.1} parent=11 // pred_region
          _
        $region16: #{tpu_custom_call.1} parent=11 // pred_fallthru
          _
      $region12: #{tpu_custom_call.1} parent=5 // pred_fallthru
        _
      %p129 = scmp.lt.s32.totalorder %s12, 2
      // Predicated region
      $region17: #{tpu_custom_call.1} parent=5 // pred_check
        %p130 = pneg %p129
      $region18: #{tpu_custom_call.1} parent=5 // pred_check_branch
        %132 = sbr.rel (%p130) target = $region20
      $region19: #{tpu_custom_call.1} parent=5 // pred_region
        // Predicated region
        $region21: #{tpu_custom_call.1} parent=19 // pred_check
          %p133 = pneg %p32
        $region22: #{tpu_custom_call.1} parent=19 // pred_check_branch
          %135 = sbr.rel (%p133) target = $region24
        $region23: #{tpu_custom_call.1} parent=19 // pred_region
          %p136 = scmp.lt.s32.totalorder %s12, 1
          %s137 = scalar_select %p136, %s12, 1
          %s138 = smul.addr %s137, 8
          %s139 = scalar_lea.vmem %s0, %s138
        $region24: #{tpu_custom_call.1} parent=19 // pred_fallthru
          _
        // Predicated region
        $region25: #{tpu_custom_call.1} parent=19 // pred_check
          %p140 = pneg %p58
        $region26: #{tpu_custom_call.1} parent=19 // pred_check_branch
          %142 = sbr.rel (%p140) target = $region28
        $region27: #{tpu_custom_call.1} parent=19 // pred_region
          %p143 = scmp.lt.s32.totalorder %s12, 1
          %s144 = scalar_select %p143, %s12, 1
          %s145 = scalar_lea.vmem %s1, %s144
        $region28: #{tpu_custom_call.1} parent=19 // pred_fallthru
          _
      $region20: #{tpu_custom_call.1} parent=5 // pred_fallthru
        _
      %p146 = scmp.le.s32.totalorder 1, %s12
      %p147 = scmp.lt.s32.totalorder %s12, 3
      %p148 = pnand %p146, %p147
      %p149 = pneg %p148
      // Predicated region
      $region29: #{tpu_custom_call.1} parent=5 // pred_check
        _
      $region30: #{tpu_custom_call.1} parent=5 // pred_check_branch
        %151 = sbr.rel (%p148) target = $region32
      $region31: #{tpu_custom_call.1} parent=5 // pred_region
        %s152 = ssub.s32 %s12, 1
        %p153 = scmp.lt.s32.totalorder %s17, 1
        %s154 = scalar_select %p153, %s17, 1
        %s155 = smul.addr %s154, 8
        %s156 = scalar_lea.vmem %s0, %s155
        %p157 = pneg %p38
        %p158 = pneg %p35
        %p159 = scmp.lt.s32.totalorder %s17, 1
        %s160 = scalar_select %p159, %s17, 1
        %s161 = scalar_lea.vmem %s1, %s160
        %p162 = pneg %p64
        %p163 = pneg %p61
        %p164 = pneg %p85
        %p165 = pneg %p82
        %p166 = pneg %p111
        %p167 = pneg %p108
        %s168 = sand.u32 %s98, 1
        %s169 = scalar_lea.sflag [#allocation3], %s168
        %s170 = sand.u32 %s98, 1
        %s171 = smul.addr %s170, 4
        %s172 = scalar_lea.vmem [#allocation2], %s171
        %p173 = scmp.lt.s32.totalorder %s17, 1
        %s174 = scalar_select %p173, %s17, 1
        %s175 = smul.addr %s174, 8
        %s176 = scalar_lea.vmem %s0, %s175
        %p177 = scmp.lt.s32.totalorder %s17, 1
        %s178 = scalar_select %p177, %s17, 1
        %s179 = scalar_lea.vmem %s1, %s178
        %v180 = vld [vmem:[%s176] sm:$0xff]
        %v181 = vld [vmem:[%s2] sm:$0xff]
        %v182 = vld [vmem:[%s2 + $0x8] sm:$0xff]
        %v183 = vld [vmem:[%s2 + $0x10] sm:$0xff]
        %v184 = vld [vmem:[%s2 + $0x18] sm:$0xff]
        %vm185 = vcmask 261120
        %v187 = vsel %vm185, %v180, 0
        %189 = vmatpush.msra.mxu0 0.0
        %190 = vmatpush.msra.mxu0 0.0
        %191 = vmatpush.msra.mxu0 0.0
        %192 = vmatpush.msra.mxu0 0.0
        %193 = vmatpush.msra.mxu0 0.0
        %194 = vmatpush.msra.mxu0 0.0
        %195 = vmatpush.msra.mxu0 0.0
        %196 = vmatpush.msra.mxu0 0.0
        %197 = vmatpush.msra.mxu0 0.0
        %198 = vmatpush.msra.mxu0 0.0
        %199 = vmatpush.msra.mxu0 0.0
        %200 = vmatpush.msra.mxu0 0.0
        %201 = vmatpush.msra.mxu0 %v184
        %202 = vmatpush.msra.mxu0 %v183
        %203 = vmatpush.msra.mxu0 %v182
        %204 = vmatpush.msra.mxu0 %v181
        %205 = vmatmul.f32.gmra.mxu0 %v187
        %v206 = vpop.f32.mrf.mxu0
        %v207 = vadd.f32 0.0, %v206
        %208 = vdwg.mxu0
        %209 = vxpose.xlu0.b32.start [1/16] %v207, 128
        %210 = vxpose.xlu0.b32.cont [2/16] 0.0, 128
        %211 = vxpose.xlu0.b32.cont [3/16] 0.0, 128
        %212 = vxpose.xlu0.b32.cont [4/16] 0.0, 128
        %213 = vxpose.xlu0.b32.cont [5/16] 0.0, 128
        %214 = vxpose.xlu0.b32.cont [6/16] 0.0, 128
        %215 = vxpose.xlu0.b32.cont [7/16] 0.0, 128
        %216 = vxpose.xlu0.b32.cont [8/16] 0.0, 128
        %217 = vxpose.xlu0.b32.cont [9/16] 0.0, 128
        %218 = vxpose.xlu0.b32.cont [10/16] 0.0, 128
        %219 = vxpose.xlu0.b32.cont [11/16] 0.0, 128
        %220 = vxpose.xlu0.b32.cont [12/16] 0.0, 128
        %221 = vxpose.xlu0.b32.cont [13/16] 0.0, 128
        %222 = vxpose.xlu0.b32.cont [14/16] 0.0, 128
        %223 = vxpose.xlu0.b32.cont [15/16] 0.0, 128
        %224 = vxpose.xlu0.b32.end [16/16] 0.0, 128
        %v225 = vpop.trf.xlu0
        %v226 = vpop.trf.xlu0
        %v227 = vpop.trf.xlu0
        %v228 = vpop.trf.xlu0
        %v229 = vpop.trf.xlu0
        %v230 = vpop.trf.xlu0
        %v231 = vpop.trf.xlu0
        %v232 = vpop.trf.xlu0
        %v233 = vpop.trf.xlu0
        %v234 = vpop.trf.xlu0
        %v235 = vpop.trf.xlu0
        %v236 = vpop.trf.xlu0
        %v237 = vpop.trf.xlu0
        %v238 = vpop.trf.xlu0
        %v239 = vpop.trf.xlu0
        %v240 = vpop.trf.xlu0
        %v241 = vld [vmem:[%s179] sm:$0x1]
        %vm242 = vcmp.gt.s32.totalorder %v241, 0
        %v243 = vsel %vm242, 1, 0
        %v244 = vperm.slane %v243, 0
        %vm245 = vcmp.eq.s32.totalorder %v244, 1
        %v246 = vsel %vm245, %v225, -inf
        %vm247 = vcmask 60416
        %v248 = vsel %vm247, %v246, -inf
        %249 = vmax.xlane.f32.xlu0 %v248
        %v250 = vpop.xlane.xlu0 %249
        %v251 = vsub.f32 %v246, %v250
        %v252 = vmul.f32 %v251, 1.442695
        %v253 = vpow.pop %v252
        %v254 = vsel %vm247, %v253, 0.0
        %255 = vadd.xlane.f32.xlu0 %v254
        %v256 = vpop.xlane.xlu0 %255
        %v257 = vrcp.pop %v256
        %v258 = vmul.f32 %v256, %v257
        %v259 = vsub.f32 1.0, %v258
        %v260 = vmul.f32 %v257, %v259
        %v261 = vadd.f32 %v257, %v260
        %vm262 = vweird.f32 %v256
        %vm263 = vweird.f32 %v257
        %vm264 = vmor %vm262, %vm263
        %v265 = vsel %vm264, %v257, %v261
        %v266 = vand.u32 2147483647, %v256
        %vm267 = vcmp.eq.f32.partialorder %v266, 8.507059e+37
        %v268 = vand.u32 %v256, 2147483648
        %v269 = vor.u32 1.1754944e-38, %v268
        %v270 = vsel %vm267, %v269, %v265
        %v271 = vmul.f32 %v253, %v270
        %vm272 = vcmask 64512
        %v274 = vsel %vm272, %v271, 0
        %276 = vmatpush.msra.mxu0 0.0
        %277 = vmatpush.msra.mxu0 0.0
        %278 = vmatpush.msra.mxu0 0.0
        %279 = vmatpush.msra.mxu0 0.0
        %280 = vmatpush.msra.mxu0 0.0
        %281 = vmatpush.msra.mxu0 0.0
        %282 = vmatpush.msra.mxu0 0.0
        %283 = vmatpush.msra.mxu0 0.0
        %284 = vmatpush.msra.mxu0 0.0
        %285 = vmatpush.msra.mxu0 0.0
        %286 = vmatpush.msra.mxu0 0.0
        %287 = vmatpush.msra.mxu0 0.0
        %288 = vmatpush.msra.mxu0 0.0
        %289 = vmatpush.msra.mxu0 0.0
        %290 = vmatpush.msra.mxu0 0.0
        %291 = vmatpush.msra.mxu0 %v180
        %292 = vmatmul.f32.gmra.mxu0 %v274
        %v293 = vpop.f32.mrf.mxu0
        %v294 = vadd.f32 0.0, %v293
        %295 = vdwg.mxu0
        %vm296 = vcmask 257024
        %297 = vst.msk [vmem:[%s172] sm:$0xf] %vm296, %v294
        %s298 = sand.u32 %s98, 1
        %s299 = scalar_lea.sflag [#allocation3], %s298
        %s300 = sand.u32 %s98, 1
        %s301 = smul.addr %s300, 4
        %s302 = scalar_lea.vmem [#allocation2], %s301
        // Predicated region
        $region33: #{tpu_custom_call.1} parent=31 // pred_check
          %p303 = pneg %p108
        $region34: #{tpu_custom_call.1} parent=31 // pred_check_branch
          %305 = sbr.rel (%p303) target = $region36
        $region35: #{tpu_custom_call.1} parent=31 // pred_region
          %307 = vsyncadd %s299, 0
          %s308 = smul.addr %s17, 4
          %s309 = scalar_lea.hbm %s3, %s308
          %s311 = sshll.u32 %s302, 4
          %s312 = int_to_ptr.vmem [resolvable:$true] %s311
          %s313 = sshll.u32 %s309, 4
          %s314 = int_to_ptr.hbm [resolvable:$true] %s313
          %316 = dma.vmem_to_hbm [thread:$0]  %s312, 64, %s314, %s299
        $region36: #{tpu_custom_call.1} parent=31 // pred_fallthru
          _
      $region32: #{tpu_custom_call.1} parent=5 // pred_fallthru
        _
      %p317 = scmp.le.s32.totalorder 2, %s12
      // Predicated region
      $region37: #{tpu_custom_call.1} parent=5 // pred_check
        %p318 = pneg %p317
      $region38: #{tpu_custom_call.1} parent=5 // pred_check_branch
        %320 = sbr.rel (%p318) target = $region40
      $region39: #{tpu_custom_call.1} parent=5 // pred_region
        %s321 = ssub.s32 %s12, 2
        // Predicated region
        $region41: #{tpu_custom_call.1} parent=39 // pred_check
          %p322 = pneg %p114
        $region42: #{tpu_custom_call.1} parent=39 // pred_check_branch
          %324 = sbr.rel (%p322) target = $region44
        $region43: #{tpu_custom_call.1} parent=39 // pred_region
          %s325 = sand.u32 %s99, 1
          %s326 = scalar_lea.sflag [#allocation3], %s325
          %s327 = sand.u32 %s99, 1
          %s328 = smul.addr %s327, 4
          %s329 = scalar_lea.vmem [#allocation2], %s328
          %331 = dma.done %s326, 64
        $region44: #{tpu_custom_call.1} parent=39 // pred_fallthru
          _
      $region40: #{tpu_custom_call.1} parent=5 // pred_fallthru
        _
    $region6: #{tpu_custom_call.1} parent=1 // loop_footer
      %s16 = sadd.s32 1, %s12
    $region7: #{tpu_custom_call.1} parent=1 // loop_footer_branch
      %11 = sbr.rel target = $region3
    $region8: #{tpu_custom_call.1} parent=1 // loop_exit
      _
    %332 = vsyncpa [#allocation3], 1
    %s333 = scalar_lea.sflag [#allocation3], 1
    %334 = vsyncpa %s333, 1

</llo_original>
